<compile_context>
chip_gen: v5e
topology: v5e:2x2
jax: 0.10.0
libtpu: 0.0.40
codegen_flags: <defaults>
</compile_context>

<pallas_src>
import jax
import jax.numpy as jnp
from jax.experimental import pallas as pl
from jax.experimental.pallas import tpu as pltpu

HIDDEN = 64
NUM_HEADS = 4
HEAD_DIM = HIDDEN // NUM_HEADS
FF_DIM = 256


def reversible_layer_kernel(x_ref, wqkv_ref, wo_ref, w1_ref, w2_ref, bias_ref, out_ref):
    B, S, E = x_ref.shape
    H, dh = NUM_HEADS, HEAD_DIM

    x2d = x_ref[...].reshape(B * S, E)                       # (B*S, E)

    # Packed biases: row 0 = b1 (FF), row 1 = bqkv (3E, bq pre-scaled), row 2 = bo, row 3 = b2.
    b_all = bias_ref[...]                                    # (4, FF)
    b_1 = b_all[0:1, :FF_DIM]                                # (1, FF)
    b_qkv = b_all[1:2, :3 * E]                               # (1, 3E)
    b_o = b_all[2:3, :E]                                     # (1, E)
    b_2 = b_all[3:4, :E]                                     # (1, E)

    # Fused QKV projection: one full-width MXU pass (Wq/bq already carry 1/sqrt(dh)).
    qkv = jnp.dot(x2d, wqkv_ref[...],
                  preferred_element_type=jnp.float32) + b_qkv  # (B*S, 3E)

    # Per-head attention.  dh=16 lane slices feed B-batched einsums; these K=dh matmuls
    # are intrinsically small and are the only narrow MXU pushes left.
    head_outs = []
    for h in range(H):
        lo = h * dh
        qh = qkv[:, lo:lo + dh].reshape(B, S, dh)
        kh = qkv[:, E + lo:E + lo + dh].reshape(B, S, dh)
        vh = qkv[:, 2 * E + lo:2 * E + lo + dh].reshape(B, S, dh)

        s = jnp.einsum('bqd,bkd->bqk', qh, kh,
                       preferred_element_type=jnp.float32)   # (B, S, S)
        s = s - jnp.max(s, axis=-1, keepdims=True)
        p = jnp.exp(s)
        # Exact reciprocal + multiply (approx=True is ~1e-3 and would threaten 1e-4 check).
        p = p * pl.reciprocal(jnp.sum(p, axis=-1, keepdims=True), approx=False)
        pvh = jnp.einsum('bqk,bkd->bqd', p, vh,
                         preferred_element_type=jnp.float32)  # (B, S, dh)
        head_outs.append(pvh.reshape(B * S, dh))

    # Concatenate heads along lanes (XLU, free slot) -> single fused output projection.
    a2d = jnp.concatenate(head_outs, axis=-1)                                     # (B*S, E)
    attn = jnp.dot(a2d, wo_ref[...], preferred_element_type=jnp.float32) + b_o    # (B*S, E)

    x1 = attn + x2d                                                               # residual 1

    # feed-forward: Linear -> ReLU -> (Dropout: identity at inference) -> Linear
    h1 = jnp.maximum(
        jnp.dot(x1, w1_ref[...], preferred_element_type=jnp.float32) + b_1, 0.0)  # (B*S, FF)
    # TODO(synk): training-mode dropout (p=0.2) not applied; inference (eval) semantics only.
    ff = jnp.dot(h1, w2_ref[...], preferred_element_type=jnp.float32) + b_2       # (B*S, E)

    out_ref[...] = (ff + x1).reshape(B, S, E)                                     # residual 2
    # TODO(synk): before scaling S, (a) add an S-tiled online-softmax K/V loop (scores grow
    # as H*S^2 f32; v7x has only 64 MiB VMEM) with explicit vmem_limit_bytes, (b) revisit a
    # lane-dense (B, S*E) output slab (masked 64-lane stores vs. one XLU repack — marginal
    # at S=8), and (c) a tolerance-gated bf16-operand path for the MXU.


def _prep_params(params):
    """Pre-transpose / pack the PyTorch-layout weights once in the wrapper (6 operands)."""
    wqkv, bqkv, wo, bo, w1, b1, w2, b2 = params
    E = HIDDEN
    scale = 1.0 / (HEAD_DIM ** 0.5)

    wqkv_t = jnp.transpose(wqkv)                    # (E, 3E); columns = [q | k | v] out features
    wqkv_t = wqkv_t.at[:, :E].multiply(scale)       # fold 1/sqrt(dh) into Wq
    b_qkv = bqkv[0].at[:E].multiply(scale)          # (3E,), bq pre-scaled
    wo_t = jnp.transpose(wo)                        # (E, E)
    w1_t = jnp.transpose(w1)                        # (E, FF)
    w2_t = jnp.transpose(w2)                        # (FF, E)

    # Pack all bias vectors into one (4, FF) operand; every vector starts at lane 0.
    width = max(FF_DIM, 3 * E)
    bias_pack = jnp.zeros((4, width), jnp.float32)
    bias_pack = bias_pack.at[0, :FF_DIM].set(b1[0])
    bias_pack = bias_pack.at[1, :3 * E].set(b_qkv)
    bias_pack = bias_pack.at[2, :E].set(bo[0])
    bias_pack = bias_pack.at[3, :E].set(b2[0])

    return (wqkv_t, wo_t, w1_t, w2_t, bias_pack)


def reversible_layer(x_sbe, params):
    """x_sbe: (seq, batch, hidden) like PyTorch nn.MultiheadAttention's default layout."""
    S, B, E = x_sbe.shape
    assert E == HIDDEN
    x = jnp.transpose(x_sbe, (1, 0, 2))             # (B, S, E): hidden on the lane axis
    prepped = _prep_params(params)

    def full_spec(a):
        return pl.BlockSpec(a.shape, lambda i: (0,) * a.ndim)

    # Single grid step on all chip generations: at B=2, S=8 the workload is overhead-bound,
    # so splitting the batch across TensorCores (v7x) would halve M, duplicate weight DMAs
    # and pay extra grid-step cost for no compute win.
    out = pl.pallas_call(
        reversible_layer_kernel,
        out_shape=jax.ShapeDtypeStruct((B, S, E), x.dtype),
        grid=(1,),
        in_specs=[full_spec(x)] + [full_spec(a) for a in prepped],
        out_specs=pl.BlockSpec((B, S, E), lambda i: (0, 0, 0)),
        compiler_params=pltpu.CompilerParams(dimension_semantics=("arbitrary",)),
    )(x, *prepped)
    return jnp.transpose(out, (1, 0, 2))            # back to (seq, batch, hidden)


def reference(x_sbe, params):
    """Pure-JAX reference matching torch semantics (eval mode)."""
    wqkv, bqkv, wo, bo, w1, b1, w2, b2 = params
    x = jnp.transpose(x_sbe, (1, 0, 2))                              # (B,S,E)
    qkv = jnp.einsum('bse,fe->bsf', x, wqkv) + bqkv[0]
    q, k, v = jnp.split(qkv, 3, axis=-1)

    def split_heads(t):
        B, S, E = t.shape
        return t.reshape(B, S, NUM_HEADS, HEAD_DIM).transpose(0, 2, 1, 3)

    qh, kh, vh = split_heads(q), split_heads(k), split_heads(v)
    scores = jnp.einsum('bhqd,bhkd->bhqk', qh, kh) / jnp.sqrt(float(HEAD_DIM))
    p = jax.nn.softmax(scores, axis=-1)
    a = jnp.einsum('bhqk,bhkd->bhqd', p, vh)
    a = a.transpose(0, 2, 1, 3).reshape(x.shape)
    attn_out = jnp.einsum('bse,fe->bsf', a, wo) + bo[0]
    x1 = attn_out + x
    h1 = jax.nn.relu(jnp.einsum('bse,fe->bsf', x1, w1) + b1[0])
    ff = jnp.einsum('bsf,ef->bse', h1, w2) + b2[0]
    return jnp.transpose(ff + x1, (1, 0, 2))


def init_params(key):
    ks = jax.random.split(key, 8)
    scale = 0.05
    wqkv = scale * jax.random.normal(ks[0], (3 * HIDDEN, HIDDEN), jnp.float32)
    bqkv = scale * jax.random.normal(ks[1], (1, 3 * HIDDEN), jnp.float32)
    wo = scale * jax.random.normal(ks[2], (HIDDEN, HIDDEN), jnp.float32)
    bo = scale * jax.random.normal(ks[3], (1, HIDDEN), jnp.float32)
    w1 = scale * jax.random.normal(ks[4], (FF_DIM, HIDDEN), jnp.float32)
    b1 = scale * jax.random.normal(ks[5], (1, FF_DIM), jnp.float32)
    w2 = scale * jax.random.normal(ks[6], (HIDDEN, FF_DIM), jnp.float32)
    b2 = scale * jax.random.normal(ks[7], (1, HIDDEN), jnp.float32)
    return (wqkv, bqkv, wo, bo, w1, b1, w2, b2)


if __name__ == "__main__":
    key = jax.random.PRNGKey(0)
    k_x, k_p = jax.random.split(key)
    SEQ, BATCH = 8, 2
    x = jax.random.normal(k_x, (SEQ, BATCH, HIDDEN), jnp.float32)  # (seq, batch, hidden)
    params = init_params(k_p)

    out = jax.block_until_ready(reversible_layer(x, params))

    ref = reference(x, params)
    assert out.shape == (SEQ, BATCH, HIDDEN)
    assert jnp.allclose(out, ref, rtol=1e-4, atol=1e-4), "mismatch vs pure-JAX reference"
    print("KERNEL_OK")
</pallas_src>

<mosaic_0001>
module attributes {stable_mosaic.version = 11 : i64} {
  func.func @reversible_layer_kernel(%arg0: i32, %arg1: memref<2x8x64xf32, #tpu.memory_space<vmem>>, %arg2: memref<64x192xf32, #tpu.memory_space<vmem>>, %arg3: memref<64x64xf32, #tpu.memory_space<vmem>>, %arg4: memref<64x256xf32, #tpu.memory_space<vmem>>, %arg5: memref<256x64xf32, #tpu.memory_space<vmem>>, %arg6: memref<4x256xf32, #tpu.memory_space<vmem>>, %arg7: memref<2x8x64xf32, #tpu.memory_space<vmem>>) attributes {dimension_semantics = [#tpu.dimension_semantics<arbitrary>], iteration_bounds = array<i64: 1>, scalar_prefetch = 0 : i64, scratch_operands = 0 : i64, tpu.core_type = #tpu.core_type<tc>, window_params = [{pipeline_mode = #tpu.pipeline_mode<synchronous>, transform_indices = @transform_0, window_bounds = array<i64: 2, 8, 64>}, {pipeline_mode = #tpu.pipeline_mode<synchronous>, transform_indices = @transform_1, window_bounds = array<i64: 64, 192>}, {pipeline_mode = #tpu.pipeline_mode<synchronous>, transform_indices = @transform_2, window_bounds = array<i64: 64, 64>}, {pipeline_mode = #tpu.pipeline_mode<synchronous>, transform_indices = @transform_3, window_bounds = array<i64: 64, 256>}, {pipeline_mode = #tpu.pipeline_mode<synchronous>, transform_indices = @transform_4, window_bounds = array<i64: 256, 64>}, {pipeline_mode = #tpu.pipeline_mode<synchronous>, transform_indices = @transform_5, window_bounds = array<i64: 4, 256>}, {pipeline_mode = #tpu.pipeline_mode<synchronous>, transform_indices = @transform_6, window_bounds = array<i64: 2, 8, 64>}]} {
    %c0 = arith.constant 0 : index
    %c0_0 = arith.constant 0 : index
    %c0_1 = arith.constant 0 : index
    %0 = vector.load %arg1[%c0, %c0_0, %c0_1] : memref<2x8x64xf32, #tpu.memory_space<vmem>>, vector<2x8x64xf32>
    %1 = vector.shape_cast %0 : vector<2x8x64xf32> to vector<16x64xf32>
    %c0_2 = arith.constant 0 : index
    %c0_3 = arith.constant 0 : index
    %2 = vector.load %arg6[%c0_2, %c0_3] : memref<4x256xf32, #tpu.memory_space<vmem>>, vector<4x256xf32>
    %3 = vector.extract_strided_slice %2 {offsets = [0, 0], sizes = [1, 256], strides = [1, 1]} : vector<4x256xf32> to vector<1x256xf32>
    %4 = vector.extract_strided_slice %2 {offsets = [1, 0], sizes = [1, 192], strides = [1, 1]} : vector<4x256xf32> to vector<1x192xf32>
    %5 = vector.extract_strided_slice %2 {offsets = [2, 0], sizes = [1, 64], strides = [1, 1]} : vector<4x256xf32> to vector<1x64xf32>
    %6 = vector.extract_strided_slice %2 {offsets = [3, 0], sizes = [1, 64], strides = [1, 1]} : vector<4x256xf32> to vector<1x64xf32>
    %c0_4 = arith.constant 0 : index
    %c0_5 = arith.constant 0 : index
    %7 = vector.load %arg2[%c0_4, %c0_5] : memref<64x192xf32, #tpu.memory_space<vmem>>, vector<64x192xf32>
    %cst = arith.constant dense<0.000000e+00> : vector<16x192xf32>
    %8 = tpu.matmul %1, %7, %cst {dimension_numbers = #tpu.dot_dimension_numbers<[1], [0], [0], [1], [0, 0, 1, 1], [], []>} : vector<16x64xf32>, vector<64x192xf32>, vector<16x192xf32> -> vector<16x192xf32>
    %9 = vector.broadcast %4 : vector<1x192xf32> to vector<16x192xf32>
    %10 = arith.addf %8, %9 : vector<16x192xf32>
    %11 = vector.extract_strided_slice %10 {offsets = [0, 0], sizes = [16, 16], strides = [1, 1]} : vector<16x192xf32> to vector<16x16xf32>
    %12 = vector.shape_cast %11 : vector<16x16xf32> to vector<2x8x16xf32>
    %13 = vector.extract_strided_slice %10 {offsets = [0, 64], sizes = [16, 16], strides = [1, 1]} : vector<16x192xf32> to vector<16x16xf32>
    %14 = vector.shape_cast %13 : vector<16x16xf32> to vector<2x8x16xf32>
    %15 = vector.extract_strided_slice %10 {offsets = [0, 128], sizes = [16, 16], strides = [1, 1]} : vector<16x192xf32> to vector<16x16xf32>
    %16 = vector.shape_cast %15 : vector<16x16xf32> to vector<2x8x16xf32>
    "tpu.trace_start"() <{level = 10 : i32, message = "bqd,bkd->bqk"}> : () -> ()
    %cst_6 = arith.constant dense<0.000000e+00> : vector<2x8x8xf32>
    %17 = tpu.matmul %12, %14, %cst_6 {dimension_numbers = #tpu.dot_dimension_numbers<[2], [2], [1], [1], [0, 0, 0, 1, 1, 1], [0], [0]>} : vector<2x8x16xf32>, vector<2x8x16xf32>, vector<2x8x8xf32> -> vector<2x8x8xf32>
    "tpu.trace_stop"() : () -> ()
    %cst_7 = arith.constant dense<0xFF800000> : vector<2x8xf32>
    %18 = vector.multi_reduction <maximumf>, %17, %cst_7 [2] : vector<2x8x8xf32> to vector<2x8xf32>
    %19 = vector.shape_cast %18 : vector<2x8xf32> to vector<2x8x1xf32>
    %20 = vector.broadcast %19 : vector<2x8x1xf32> to vector<2x8x8xf32>
    %21 = arith.subf %17, %20 : vector<2x8x8xf32>
    %22 = math.exp %21 : vector<2x8x8xf32>
    %cst_8 = arith.constant dense<0.000000e+00> : vector<2x8xf32>
    %23 = vector.multi_reduction <add>, %22, %cst_8 [2] : vector<2x8x8xf32> to vector<2x8xf32>
    %24 = vector.shape_cast %23 : vector<2x8xf32> to vector<2x8x1xf32>
    %25 = tpu.reciprocal %24 : vector<2x8x1xf32> -> vector<2x8x1xf32>
    %26 = vector.broadcast %25 : vector<2x8x1xf32> to vector<2x8x8xf32>
    %27 = arith.mulf %22, %26 : vector<2x8x8xf32>
    "tpu.trace_start"() <{level = 10 : i32, message = "bqk,bkd->bqd"}> : () -> ()
    %cst_9 = arith.constant dense<0.000000e+00> : vector<2x8x16xf32>
    %28 = tpu.matmul %27, %16, %cst_9 {dimension_numbers = #tpu.dot_dimension_numbers<[2], [1], [1], [2], [0, 0, 0, 1, 1, 2], [0], [0]>} : vector<2x8x8xf32>, vector<2x8x16xf32>, vector<2x8x16xf32> -> vector<2x8x16xf32>
    "tpu.trace_stop"() : () -> ()
    %29 = vector.shape_cast %28 : vector<2x8x16xf32> to vector<16x16xf32>
    %30 = vector.extract_strided_slice %10 {offsets = [0, 16], sizes = [16, 16], strides = [1, 1]} : vector<16x192xf32> to vector<16x16xf32>
    %31 = vector.shape_cast %30 : vector<16x16xf32> to vector<2x8x16xf32>
    %32 = vector.extract_strided_slice %10 {offsets = [0, 80], sizes = [16, 16], strides = [1, 1]} : vector<16x192xf32> to vector<16x16xf32>
    %33 = vector.shape_cast %32 : vector<16x16xf32> to vector<2x8x16xf32>
    %34 = vector.extract_strided_slice %10 {offsets = [0, 144], sizes = [16, 16], strides = [1, 1]} : vector<16x192xf32> to vector<16x16xf32>
    %35 = vector.shape_cast %34 : vector<16x16xf32> to vector<2x8x16xf32>
    "tpu.trace_start"() <{level = 10 : i32, message = "bqd,bkd->bqk"}> : () -> ()
    %cst_10 = arith.constant dense<0.000000e+00> : vector<2x8x8xf32>
    %36 = tpu.matmul %31, %33, %cst_10 {dimension_numbers = #tpu.dot_dimension_numbers<[2], [2], [1], [1], [0, 0, 0, 1, 1, 1], [0], [0]>} : vector<2x8x16xf32>, vector<2x8x16xf32>, vector<2x8x8xf32> -> vector<2x8x8xf32>
    "tpu.trace_stop"() : () -> ()
    %cst_11 = arith.constant dense<0xFF800000> : vector<2x8xf32>
    %37 = vector.multi_reduction <maximumf>, %36, %cst_11 [2] : vector<2x8x8xf32> to vector<2x8xf32>
    %38 = vector.shape_cast %37 : vector<2x8xf32> to vector<2x8x1xf32>
    %39 = vector.broadcast %38 : vector<2x8x1xf32> to vector<2x8x8xf32>
    %40 = arith.subf %36, %39 : vector<2x8x8xf32>
    %41 = math.exp %40 : vector<2x8x8xf32>
    %cst_12 = arith.constant dense<0.000000e+00> : vector<2x8xf32>
    %42 = vector.multi_reduction <add>, %41, %cst_12 [2] : vector<2x8x8xf32> to vector<2x8xf32>
    %43 = vector.shape_cast %42 : vector<2x8xf32> to vector<2x8x1xf32>
    %44 = tpu.reciprocal %43 : vector<2x8x1xf32> -> vector<2x8x1xf32>
    %45 = vector.broadcast %44 : vector<2x8x1xf32> to vector<2x8x8xf32>
    %46 = arith.mulf %41, %45 : vector<2x8x8xf32>
    "tpu.trace_start"() <{level = 10 : i32, message = "bqk,bkd->bqd"}> : () -> ()
    %cst_13 = arith.constant dense<0.000000e+00> : vector<2x8x16xf32>
    %47 = tpu.matmul %46, %35, %cst_13 {dimension_numbers = #tpu.dot_dimension_numbers<[2], [1], [1], [2], [0, 0, 0, 1, 1, 2], [0], [0]>} : vector<2x8x8xf32>, vector<2x8x16xf32>, vector<2x8x16xf32> -> vector<2x8x16xf32>
    "tpu.trace_stop"() : () -> ()
    %48 = vector.shape_cast %47 : vector<2x8x16xf32> to vector<16x16xf32>
    %49 = vector.extract_strided_slice %10 {offsets = [0, 32], sizes = [16, 16], strides = [1, 1]} : vector<16x192xf32> to vector<16x16xf32>
    %50 = vector.shape_cast %49 : vector<16x16xf32> to vector<2x8x16xf32>
    %51 = vector.extract_strided_slice %10 {offsets = [0, 96], sizes = [16, 16], strides = [1, 1]} : vector<16x192xf32> to vector<16x16xf32>
    %52 = vector.shape_cast %51 : vector<16x16xf32> to vector<2x8x16xf32>
    %53 = vector.extract_strided_slice %10 {offsets = [0, 160], sizes = [16, 16], strides = [1, 1]} : vector<16x192xf32> to vector<16x16xf32>
    %54 = vector.shape_cast %53 : vector<16x16xf32> to vector<2x8x16xf32>
    "tpu.trace_start"() <{level = 10 : i32, message = "bqd,bkd->bqk"}> : () -> ()
    %cst_14 = arith.constant dense<0.000000e+00> : vector<2x8x8xf32>
    %55 = tpu.matmul %50, %52, %cst_14 {dimension_numbers = #tpu.dot_dimension_numbers<[2], [2], [1], [1], [0, 0, 0, 1, 1, 1], [0], [0]>} : vector<2x8x16xf32>, vector<2x8x16xf32>, vector<2x8x8xf32> -> vector<2x8x8xf32>
    "tpu.trace_stop"() : () -> ()
    %cst_15 = arith.constant dense<0xFF800000> : vector<2x8xf32>
    %56 = vector.multi_reduction <maximumf>, %55, %cst_15 [2] : vector<2x8x8xf32> to vector<2x8xf32>
    %57 = vector.shape_cast %56 : vector<2x8xf32> to vector<2x8x1xf32>
    %58 = vector.broadcast %57 : vector<2x8x1xf32> to vector<2x8x8xf32>
    %59 = arith.subf %55, %58 : vector<2x8x8xf32>
    %60 = math.exp %59 : vector<2x8x8xf32>
    %cst_16 = arith.constant dense<0.000000e+00> : vector<2x8xf32>
    %61 = vector.multi_reduction <add>, %60, %cst_16 [2] : vector<2x8x8xf32> to vector<2x8xf32>
    %62 = vector.shape_cast %61 : vector<2x8xf32> to vector<2x8x1xf32>
    %63 = tpu.reciprocal %62 : vector<2x8x1xf32> -> vector<2x8x1xf32>
    %64 = vector.broadcast %63 : vector<2x8x1xf32> to vector<2x8x8xf32>
    %65 = arith.mulf %60, %64 : vector<2x8x8xf32>
    "tpu.trace_start"() <{level = 10 : i32, message = "bqk,bkd->bqd"}> : () -> ()
    %cst_17 = arith.constant dense<0.000000e+00> : vector<2x8x16xf32>
    %66 = tpu.matmul %65, %54, %cst_17 {dimension_numbers = #tpu.dot_dimension_numbers<[2], [1], [1], [2], [0, 0, 0, 1, 1, 2], [0], [0]>} : vector<2x8x8xf32>, vector<2x8x16xf32>, vector<2x8x16xf32> -> vector<2x8x16xf32>
    "tpu.trace_stop"() : () -> ()
    %67 = vector.shape_cast %66 : vector<2x8x16xf32> to vector<16x16xf32>
    %68 = vector.extract_strided_slice %10 {offsets = [0, 48], sizes = [16, 16], strides = [1, 1]} : vector<16x192xf32> to vector<16x16xf32>
    %69 = vector.shape_cast %68 : vector<16x16xf32> to vector<2x8x16xf32>
    %70 = vector.extract_strided_slice %10 {offsets = [0, 112], sizes = [16, 16], strides = [1, 1]} : vector<16x192xf32> to vector<16x16xf32>
    %71 = vector.shape_cast %70 : vector<16x16xf32> to vector<2x8x16xf32>
    %72 = vector.extract_strided_slice %10 {offsets = [0, 176], sizes = [16, 16], strides = [1, 1]} : vector<16x192xf32> to vector<16x16xf32>
    %73 = vector.shape_cast %72 : vector<16x16xf32> to vector<2x8x16xf32>
    "tpu.trace_start"() <{level = 10 : i32, message = "bqd,bkd->bqk"}> : () -> ()
    %cst_18 = arith.constant dense<0.000000e+00> : vector<2x8x8xf32>
    %74 = tpu.matmul %69, %71, %cst_18 {dimension_numbers = #tpu.dot_dimension_numbers<[2], [2], [1], [1], [0, 0, 0, 1, 1, 1], [0], [0]>} : vector<2x8x16xf32>, vector<2x8x16xf32>, vector<2x8x8xf32> -> vector<2x8x8xf32>
    "tpu.trace_stop"() : () -> ()
    %cst_19 = arith.constant dense<0xFF800000> : vector<2x8xf32>
    %75 = vector.multi_reduction <maximumf>, %74, %cst_19 [2] : vector<2x8x8xf32> to vector<2x8xf32>
    %76 = vector.shape_cast %75 : vector<2x8xf32> to vector<2x8x1xf32>
    %77 = vector.broadcast %76 : vector<2x8x1xf32> to vector<2x8x8xf32>
    %78 = arith.subf %74, %77 : vector<2x8x8xf32>
    %79 = math.exp %78 : vector<2x8x8xf32>
    %cst_20 = arith.constant dense<0.000000e+00> : vector<2x8xf32>
    %80 = vector.multi_reduction <add>, %79, %cst_20 [2] : vector<2x8x8xf32> to vector<2x8xf32>
    %81 = vector.shape_cast %80 : vector<2x8xf32> to vector<2x8x1xf32>
    %82 = tpu.reciprocal %81 : vector<2x8x1xf32> -> vector<2x8x1xf32>
    %83 = vector.broadcast %82 : vector<2x8x1xf32> to vector<2x8x8xf32>
    %84 = arith.mulf %79, %83 : vector<2x8x8xf32>
    "tpu.trace_start"() <{level = 10 : i32, message = "bqk,bkd->bqd"}> : () -> ()
    %cst_21 = arith.constant dense<0.000000e+00> : vector<2x8x16xf32>
    %85 = tpu.matmul %84, %73, %cst_21 {dimension_numbers = #tpu.dot_dimension_numbers<[2], [1], [1], [2], [0, 0, 0, 1, 1, 2], [0], [0]>} : vector<2x8x8xf32>, vector<2x8x16xf32>, vector<2x8x16xf32> -> vector<2x8x16xf32>
    "tpu.trace_stop"() : () -> ()
    %86 = vector.shape_cast %85 : vector<2x8x16xf32> to vector<16x16xf32>
    %87 = tpu.concatenate %29, %48, %67, %86 in 1 : vector<16x16xf32>, vector<16x16xf32>, vector<16x16xf32>, vector<16x16xf32> -> vector<16x64xf32>
    %c0_22 = arith.constant 0 : index
    %c0_23 = arith.constant 0 : index
    %88 = vector.load %arg3[%c0_22, %c0_23] : memref<64x64xf32, #tpu.memory_space<vmem>>, vector<64x64xf32>
    %cst_24 = arith.constant dense<0.000000e+00> : vector<16x64xf32>
    %89 = tpu.matmul %87, %88, %cst_24 {dimension_numbers = #tpu.dot_dimension_numbers<[1], [0], [0], [1], [0, 0, 1, 1], [], []>} : vector<16x64xf32>, vector<64x64xf32>, vector<16x64xf32> -> vector<16x64xf32>
    %90 = vector.broadcast %5 : vector<1x64xf32> to vector<16x64xf32>
    %91 = arith.addf %89, %90 : vector<16x64xf32>
    %92 = arith.addf %91, %1 : vector<16x64xf32>
    %c0_25 = arith.constant 0 : index
    %c0_26 = arith.constant 0 : index
    %93 = vector.load %arg4[%c0_25, %c0_26] : memref<64x256xf32, #tpu.memory_space<vmem>>, vector<64x256xf32>
    %cst_27 = arith.constant dense<0.000000e+00> : vector<16x256xf32>
    %94 = tpu.matmul %92, %93, %cst_27 {dimension_numbers = #tpu.dot_dimension_numbers<[1], [0], [0], [1], [0, 0, 1, 1], [], []>} : vector<16x64xf32>, vector<64x256xf32>, vector<16x256xf32> -> vector<16x256xf32>
    %95 = vector.broadcast %3 : vector<1x256xf32> to vector<16x256xf32>
    %96 = arith.addf %94, %95 : vector<16x256xf32>
    %cst_28 = arith.constant 0.000000e+00 : f32
    %97 = vector.broadcast %cst_28 : f32 to vector<16x256xf32>
    %98 = arith.maximumf %96, %97 : vector<16x256xf32>
    %c0_29 = arith.constant 0 : index
    %c0_30 = arith.constant 0 : index
    %99 = vector.load %arg5[%c0_29, %c0_30] : memref<256x64xf32, #tpu.memory_space<vmem>>, vector<256x64xf32>
    %cst_31 = arith.constant dense<0.000000e+00> : vector<16x64xf32>
    %100 = tpu.matmul %98, %99, %cst_31 {dimension_numbers = #tpu.dot_dimension_numbers<[1], [0], [0], [1], [0, 0, 1, 1], [], []>} : vector<16x256xf32>, vector<256x64xf32>, vector<16x64xf32> -> vector<16x64xf32>
    %101 = vector.broadcast %6 : vector<1x64xf32> to vector<16x64xf32>
    %102 = arith.addf %100, %101 : vector<16x64xf32>
    %103 = arith.addf %102, %92 : vector<16x64xf32>
    %104 = vector.shape_cast %103 : vector<16x64xf32> to vector<2x8x64xf32>
    %c0_32 = arith.constant 0 : index
    %c0_33 = arith.constant 0 : index
    %c0_34 = arith.constant 0 : index
    %105 = vector.load %arg7[%c0_32, %c0_33, %c0_34] : memref<2x8x64xf32, #tpu.memory_space<vmem>>, vector<2x8x64xf32>
    tpu.vector_store %arg7[%c0_32, %c0_33, %c0_34], %104 {strides = array<i32>} : memref<2x8x64xf32, #tpu.memory_space<vmem>>, vector<2x8x64xf32>,
    return
  }
  func.func @transform_0(%arg0: i32) -> (i32, i32, i32) {
    %c0_i32 = arith.constant 0 : i32
    %c0_i32_0 = arith.constant 0 : i32
    %c0_i32_1 = arith.constant 0 : i32
    %c0_i32_2 = arith.constant 0 : i32
    return %c0_i32, %c0_i32_0, %c0_i32_1 : i32, i32, i32
  }
  func.func @transform_1(%arg0: i32) -> (i32, i32) {
    %c0_i32 = arith.constant 0 : i32
    %c0_i32_0 = arith.constant 0 : i32
    %c0_i32_1 = arith.constant 0 : i32
    return %c0_i32, %c0_i32_0 : i32, i32
  }
  func.func @transform_2(%arg0: i32) -> (i32, i32) {
    %c0_i32 = arith.constant 0 : i32
    %c0_i32_0 = arith.constant 0 : i32
    %c0_i32_1 = arith.constant 0 : i32
    return %c0_i32, %c0_i32_0 : i32, i32
  }
  func.func @transform_3(%arg0: i32) -> (i32, i32) {
    %c0_i32 = arith.constant 0 : i32
    %c0_i32_0 = arith.constant 0 : i32
    %c0_i32_1 = arith.constant 0 : i32
    return %c0_i32, %c0_i32_0 : i32, i32
  }
  func.func @transform_4(%arg0: i32) -> (i32, i32) {
    %c0_i32 = arith.constant 0 : i32
    %c0_i32_0 = arith.constant 0 : i32
    %c0_i32_1 = arith.constant 0 : i32
    return %c0_i32, %c0_i32_0 : i32, i32
  }
  func.func @transform_5(%arg0: i32) -> (i32, i32) {
    %c0_i32 = arith.constant 0 : i32
    %c0_i32_0 = arith.constant 0 : i32
    %c0_i32_1 = arith.constant 0 : i32
    return %c0_i32, %c0_i32_0 : i32, i32
  }
  func.func @transform_6(%arg0: i32) -> (i32, i32, i32) {
    %c0_i32 = arith.constant 0 : i32
    %c0_i32_0 = arith.constant 0 : i32
    %c0_i32_1 = arith.constant 0 : i32
    %c0_i32_2 = arith.constant 0 : i32
    return %c0_i32, %c0_i32_0, %c0_i32_1 : i32, i32, i32
  }
}

</mosaic_0001>

<llo_original>
// kernel: tpu_custom_call.1
$region0: #{tpu_custom_call.1}
  #allocation0 [shape = 'u32[]', space=smem, size = 0x4, offset = 0x4, fixed_abs, tag = 'smem constant byte address 0x4 - core index']
  #allocation1 [shape = 'u32[72,128]{1,0:T(1,128)}', space=vmem, size = 0x9000, scoped, tag = 'internal scratch']
  %s0 = inlined_call_operand.vmem [shape: f32[2,8,64], index: 0, kind: input, shape index: {}]
  %s1 = inlined_call_operand.vmem [shape: f32[64,192], index: 1, kind: input, shape index: {}]
  %s2 = inlined_call_operand.vmem [shape: f32[64,64], index: 2, kind: input, shape index: {}]
  %s3 = inlined_call_operand.vmem [shape: f32[64,256], index: 3, kind: input, shape index: {}]
  %s4 = inlined_call_operand.vmem [shape: f32[256,64], index: 4, kind: input, shape index: {}]
  %s5 = inlined_call_operand.vmem [shape: f32[4,256], index: 5, kind: input, shape index: {}]
  %s6 = inlined_call_operand.hbm [shape: f32[2,8,64], index: 6, kind: output, shape index: {}]
  %s7 = sld [smem:[#allocation0]]
  $region34: #{tpu_custom_call.1} parent=0
    _
  %s9 = ssub.s32 1, %s7
  %s10 = scalar_select 0, %s9, %s7
  $region1: #{tpu_custom_call.1} parent=0
    #allocation2 [shape = 'u8[8192]{0}', space=vmem, size = 0x2000, scoped, tag = 'output window, operand 0, single buffered']
    #allocation3 [shape = 's32[1]{0}', space=sflag, size = 0x4, scoped, tag = 'scoped memory for tpu_custom_call.1']
    %11 = vsyncpa [#allocation3], 0
    // Predicated region
    $region2: #{tpu_custom_call.1} parent=1 // pred_check
      _
    $region3: #{tpu_custom_call.1} parent=1 // pred_check_branch
      %13 = sbr.rel (0) target = $region5
    $region4: #{tpu_custom_call.1} parent=1 // pred_region
      _
    $region5: #{tpu_custom_call.1} parent=1 // pred_fallthru
      _
    // Predicated region
    $region6: #{tpu_custom_call.1} parent=1 // pred_check
      _
    $region7: #{tpu_custom_call.1} parent=1 // pred_check_branch
      %15 = sbr.rel (0) target = $region9
    $region8: #{tpu_custom_call.1} parent=1 // pred_region
      _
    $region9: #{tpu_custom_call.1} parent=1 // pred_fallthru
      _
    // Predicated region
    $region10: #{tpu_custom_call.1} parent=1 // pred_check
      _
    $region11: #{tpu_custom_call.1} parent=1 // pred_check_branch
      %17 = sbr.rel (0) target = $region13
    $region12: #{tpu_custom_call.1} parent=1 // pred_region
      _
    $region13: #{tpu_custom_call.1} parent=1 // pred_fallthru
      _
    // Predicated region
    $region14: #{tpu_custom_call.1} parent=1 // pred_check
      _
    $region15: #{tpu_custom_call.1} parent=1 // pred_check_branch
      %19 = sbr.rel (0) target = $region17
    $region16: #{tpu_custom_call.1} parent=1 // pred_region
      _
    $region17: #{tpu_custom_call.1} parent=1 // pred_fallthru
      _
    // Predicated region
    $region18: #{tpu_custom_call.1} parent=1 // pred_check
      _
    $region19: #{tpu_custom_call.1} parent=1 // pred_check_branch
      %21 = sbr.rel (0) target = $region21
    $region20: #{tpu_custom_call.1} parent=1 // pred_region
      _
    $region21: #{tpu_custom_call.1} parent=1 // pred_fallthru
      _
    // Predicated region
    $region22: #{tpu_custom_call.1} parent=1 // pred_check
      _
    $region23: #{tpu_custom_call.1} parent=1 // pred_check_branch
      %23 = sbr.rel (0) target = $region25
    $region24: #{tpu_custom_call.1} parent=1 // pred_region
      _
    $region25: #{tpu_custom_call.1} parent=1 // pred_fallthru
      _
    %v24 = vld [vmem:[%s0] sm:$0xff]
    %v25 = vld [vmem:[%s0 + $0x8] sm:$0xff]
    %v26 = vld [vmem:[%s5] sm:$0xff]
    %v27 = vld [vmem:[%s1] sm:$0xff]
    %v28 = vld [vmem:[%s1 + $0x8] sm:$0xff]
    %v29 = vld [vmem:[%s1 + $0x10] sm:$0xff]
    %v30 = vld [vmem:[%s1 + $0x18] sm:$0xff]
    %v31 = vld [vmem:[%s1 + $0x20] sm:$0xff]
    %v32 = vld [vmem:[%s1 + $0x28] sm:$0xff]
    %v33 = vld [vmem:[%s1 + $0x30] sm:$0xff]
    %v34 = vld [vmem:[%s1 + $0x38] sm:$0xff]
    %v35 = vld [vmem:[%s1 + $0x40] sm:$0xff]
    %v36 = vld [vmem:[%s1 + $0x48] sm:$0xff]
    %v37 = vld [vmem:[%s1 + $0x50] sm:$0xff]
    %v38 = vld [vmem:[%s1 + $0x58] sm:$0xff]
    %v39 = vld [vmem:[%s1 + $0x60] sm:$0xff]
    %v40 = vld [vmem:[%s1 + $0x68] sm:$0xff]
    %v41 = vld [vmem:[%s1 + $0x70] sm:$0xff]
    %v42 = vld [vmem:[%s1 + $0x78] sm:$0xff]
    %v44 = vperm.slane %v26, 1
    %v45 = vperm.slane %v26, 5
    %v48 = vperm.slane %v44, 1
    %v49 = vperm.slane %v45, 1
    %vm50 = vcmask 523264
    %v52 = vsel %vm50, %v24, 0
    %v55 = vsel %vm50, %v25, 0
    %57 = vmatpush.msra.mxu0 0.0
    %58 = vmatpush.msra.mxu0 0.0
    %59 = vmatpush.msra.mxu0 0.0
    %60 = vmatpush.msra.mxu0 0.0
    %61 = vmatpush.msra.mxu0 0.0
    %62 = vmatpush.msra.mxu0 0.0
    %63 = vmatpush.msra.mxu0 0.0
    %64 = vmatpush.msra.mxu0 0.0
    %65 = vmatpush.msra.mxu0 %v41
    %66 = vmatpush.msra.mxu0 %v39
    %67 = vmatpush.msra.mxu0 %v37
    %68 = vmatpush.msra.mxu0 %v35
    %69 = vmatpush.msra.mxu0 %v33
    %70 = vmatpush.msra.mxu0 %v31
    %71 = vmatpush.msra.mxu0 %v29
    %72 = vmatpush.msra.mxu0 %v27
    %73 = vmatmul.f32.gmra.mxu0 %v52
    %v74 = vpop.f32.mrf.mxu0
    %v75 = vadd.f32 %v48, %v74
    %76 = vmatmul.f32.gmra.mxu0 %v55
    %v77 = vpop.f32.mrf.mxu0
    %v78 = vadd.f32 %v48, %v77
    %79 = vdwg.mxu0
    %80 = vmatpush.msra.mxu0 0.0
    %81 = vmatpush.msra.mxu0 0.0
    %82 = vmatpush.msra.mxu0 0.0
    %83 = vmatpush.msra.mxu0 0.0
    %84 = vmatpush.msra.mxu0 0.0
    %85 = vmatpush.msra.mxu0 0.0
    %86 = vmatpush.msra.mxu0 0.0
    %87 = vmatpush.msra.mxu0 0.0
    %88 = vmatpush.msra.mxu0 %v42
    %89 = vmatpush.msra.mxu0 %v40
    %90 = vmatpush.msra.mxu0 %v38
    %91 = vmatpush.msra.mxu0 %v36
    %92 = vmatpush.msra.mxu0 %v34
    %93 = vmatpush.msra.mxu0 %v32
    %94 = vmatpush.msra.mxu0 %v30
    %95 = vmatpush.msra.mxu0 %v28
    %96 = vmatmul.f32.gmra.mxu0 %v52
    %v97 = vpop.f32.mrf.mxu0
    %v98 = vadd.f32 %v49, %v97
    %99 = vmatmul.f32.gmra.mxu0 %v55
    %v100 = vpop.f32.mrf.mxu0
    %v101 = vadd.f32 %v49, %v100
    %102 = vdwg.mxu0
    %104 = vrot.lane.b32.xlu0 %v75, 64
    %v105 = vpop.permute.xlu0 %104
    %vm106 = vcmask 130048
    %v107 = vsel %vm106, %v75, 0
    %v109 = vsel %vm106, %v105, 0
    %111 = vmatpush.xpose.msra.mxu0 0.0
    %112 = vmatpush.xpose.msra.mxu0 0.0
    %113 = vmatpush.xpose.msra.mxu0 0.0
    %114 = vmatpush.xpose.msra.mxu0 0.0
    %115 = vmatpush.xpose.msra.mxu0 0.0
    %116 = vmatpush.xpose.msra.mxu0 0.0
    %117 = vmatpush.xpose.msra.mxu0 0.0
    %118 = vmatpush.xpose.msra.mxu0 0.0
    %119 = vmatpush.xpose.msra.mxu0 0.0
    %120 = vmatpush.xpose.msra.mxu0 0.0
    %121 = vmatpush.xpose.msra.mxu0 0.0
    %122 = vmatpush.xpose.msra.mxu0 0.0
    %123 = vmatpush.xpose.msra.mxu0 0.0
    %124 = vmatpush.xpose.msra.mxu0 0.0
    %125 = vmatpush.xpose.msra.mxu0 0.0
    %126 = vmatpush.xpose.msra.mxu0 %v109
    %127 = vmatmul.f32.gmra.mxu0 %v107
    %v128 = vpop.f32.mrf.mxu0
    %v129 = vadd.f32 0.0, %v128
    %130 = vdwg.mxu0
    %132 = vrot.lane.b32.xlu0 %v78, 64
    %v133 = vpop.permute.xlu0 %132
    %v134 = vsel %vm106, %v78, 0
    %v136 = vsel %vm106, %v133, 0
    %138 = vmatpush.xpose.msra.mxu0 0.0
    %139 = vmatpush.xpose.msra.mxu0 0.0
    %140 = vmatpush.xpose.msra.mxu0 0.0
    %141 = vmatpush.xpose.msra.mxu0 0.0
    %142 = vmatpush.xpose.msra.mxu0 0.0
    %143 = vmatpush.xpose.msra.mxu0 0.0
    %144 = vmatpush.xpose.msra.mxu0 0.0
    %145 = vmatpush.xpose.msra.mxu0 0.0
    %146 = vmatpush.xpose.msra.mxu0 0.0
    %147 = vmatpush.xpose.msra.mxu0 0.0
    %148 = vmatpush.xpose.msra.mxu0 0.0
    %149 = vmatpush.xpose.msra.mxu0 0.0
    %150 = vmatpush.xpose.msra.mxu0 0.0
    %151 = vmatpush.xpose.msra.mxu0 0.0
    %152 = vmatpush.xpose.msra.mxu0 0.0
    %153 = vmatpush.xpose.msra.mxu0 %v136
    %154 = vmatmul.f32.gmra.mxu0 %v134
    %v155 = vpop.f32.mrf.mxu0
    %v156 = vadd.f32 0.0, %v155
    %157 = vdwg.mxu0
    %vm158 = vcmask 64512
    %v159 = vsel %vm158, %v129, -inf
    %160 = vmax.xlane.f32.xlu0 %v159
    %v161 = vpop.xlane.xlu0 %160
    %v162 = vsel %vm158, %v156, -inf
    %163 = vmax.xlane.f32.xlu0 %v162
    %v164 = vpop.xlane.xlu0 %163
    %v165 = vsub.f32 %v129, %v161
    %v166 = vsub.f32 %v156, %v164
    %v167 = vmul.f32 %v165, 1.442695
    %v168 = vpow.pop %v167
    %v169 = vmul.f32 %v166, 1.442695
    %v170 = vpow.pop %v169
    %v171 = vsel %vm158, %v168, 0.0
    %172 = vadd.xlane.f32.xlu0 %v171
    %v173 = vpop.xlane.xlu0 %172
    %v174 = vsel %vm158, %v170, 0.0
    %175 = vadd.xlane.f32.xlu0 %v174
    %v176 = vpop.xlane.xlu0 %175
    %v177 = vrcp.pop %v173
    %v178 = vmul.f32 %v173, %v177
    %v179 = vsub.f32 1.0, %v178
    %v180 = vmul.f32 %v177, %v179
    %v181 = vadd.f32 %v177, %v180
    %vm182 = vweird.f32 %v173
    %vm183 = vweird.f32 %v177
    %vm184 = vmor %vm182, %vm183
    %v185 = vsel %vm184, %v177, %v181
    %v186 = vand.u32 2147483647, %v173
    %vm187 = vcmp.eq.f32.partialorder %v186, 8.507059e+37
    %v188 = vand.u32 %v173, 2147483648
    %v189 = vor.u32 1.1754944e-38, %v188
    %v190 = vsel %vm187, %v189, %v185
    %v191 = vrcp.pop %v176
    %v192 = vmul.f32 %v176, %v191
    %v193 = vsub.f32 1.0, %v192
    %v194 = vmul.f32 %v191, %v193
    %v195 = vadd.f32 %v191, %v194
    %vm196 = vweird.f32 %v176
    %vm197 = vweird.f32 %v191
    %vm198 = vmor %vm196, %vm197
    %v199 = vsel %vm198, %v191, %v195
    %v200 = vand.u32 2147483647, %v176
    %vm201 = vcmp.eq.f32.partialorder %v200, 8.507059e+37
    %v202 = vand.u32 %v176, 2147483648
    %v203 = vor.u32 1.1754944e-38, %v202
    %v204 = vsel %vm201, %v203, %v199
    %v205 = vmul.f32 %v168, %v190
    %v206 = vmul.f32 %v170, %v204
    %v208 = vsel %vm158, %v205, 0
    %210 = vmatpush.msra.mxu0 0.0
    %211 = vmatpush.msra.mxu0 0.0
    %212 = vmatpush.msra.mxu0 0.0
    %213 = vmatpush.msra.mxu0 0.0
    %214 = vmatpush.msra.mxu0 0.0
    %215 = vmatpush.msra.mxu0 0.0
    %216 = vmatpush.msra.mxu0 0.0
    %217 = vmatpush.msra.mxu0 0.0
    %218 = vmatpush.msra.mxu0 0.0
    %219 = vmatpush.msra.mxu0 0.0
    %220 = vmatpush.msra.mxu0 0.0
    %221 = vmatpush.msra.mxu0 0.0
    %222 = vmatpush.msra.mxu0 0.0
    %223 = vmatpush.msra.mxu0 0.0
    %224 = vmatpush.msra.mxu0 0.0
    %225 = vmatpush.msra.mxu0 %v98
    %226 = vmatmul.f32.gmra.mxu0 %v208
    %v227 = vpop.f32.mrf.mxu0
    %v228 = vadd.f32 0.0, %v227
    %229 = vdwg.mxu0
    %v231 = vsel %vm158, %v206, 0
    %233 = vmatpush.msra.mxu0 0.0
    %234 = vmatpush.msra.mxu0 0.0
    %235 = vmatpush.msra.mxu0 0.0
    %236 = vmatpush.msra.mxu0 0.0
    %237 = vmatpush.msra.mxu0 0.0
    %238 = vmatpush.msra.mxu0 0.0
    %239 = vmatpush.msra.mxu0 0.0
    %240 = vmatpush.msra.mxu0 0.0
    %241 = vmatpush.msra.mxu0 0.0
    %242 = vmatpush.msra.mxu0 0.0
    %243 = vmatpush.msra.mxu0 0.0
    %244 = vmatpush.msra.mxu0 0.0
    %245 = vmatpush.msra.mxu0 0.0
    %246 = vmatpush.msra.mxu0 0.0
    %247 = vmatpush.msra.mxu0 0.0
    %248 = vmatpush.msra.mxu0 %v101
    %249 = vmatmul.f32.gmra.mxu0 %v231
    %v250 = vpop.f32.mrf.mxu0
    %v251 = vadd.f32 0.0, %v250
    %252 = vdwg.mxu0
    %253 = vrot.lane.b32.xlu0 %v75, 112
    %v254 = vpop.permute.xlu0 %253
    %255 = vrot.lane.b32.xlu0 %v75, 48
    %v256 = vpop.permute.xlu0 %255
    %v257 = vsel %vm106, %v254, 0
    %v259 = vsel %vm106, %v256, 0
    %261 = vmatpush.xpose.msra.mxu0 0.0
    %262 = vmatpush.xpose.msra.mxu0 0.0
    %263 = vmatpush.xpose.msra.mxu0 0.0
    %264 = vmatpush.xpose.msra.mxu0 0.0
    %265 = vmatpush.xpose.msra.mxu0 0.0
    %266 = vmatpush.xpose.msra.mxu0 0.0
    %267 = vmatpush.xpose.msra.mxu0 0.0
    %268 = vmatpush.xpose.msra.mxu0 0.0
    %269 = vmatpush.xpose.msra.mxu0 0.0
    %270 = vmatpush.xpose.msra.mxu0 0.0
    %271 = vmatpush.xpose.msra.mxu0 0.0
    %272 = vmatpush.xpose.msra.mxu0 0.0
    %273 = vmatpush.xpose.msra.mxu0 0.0
    %274 = vmatpush.xpose.msra.mxu0 0.0
    %275 = vmatpush.xpose.msra.mxu0 0.0
    %276 = vmatpush.xpose.msra.mxu0 %v259
    %277 = vmatmul.f32.gmra.mxu0 %v257
    %v278 = vpop.f32.mrf.mxu0
    %v279 = vadd.f32 0.0, %v278
    %280 = vdwg.mxu0
    %281 = vrot.lane.b32.xlu0 %v78, 112
    %v282 = vpop.permute.xlu0 %281
    %283 = vrot.lane.b32.xlu0 %v78, 48
    %v284 = vpop.permute.xlu0 %283
    %v285 = vsel %vm106, %v282, 0
    %v287 = vsel %vm106, %v284, 0
    %289 = vmatpush.xpose.msra.mxu0 0.0
    %290 = vmatpush.xpose.msra.mxu0 0.0
    %291 = vmatpush.xpose.msra.mxu0 0.0
    %292 = vmatpush.xpose.msra.mxu0 0.0
    %293 = vmatpush.xpose.msra.mxu0 0.0
    %294 = vmatpush.xpose.msra.mxu0 0.0
    %295 = vmatpush.xpose.msra.mxu0 0.0
    %296 = vmatpush.xpose.msra.mxu0 0.0
    %297 = vmatpush.xpose.msra.mxu0 0.0
    %298 = vmatpush.xpose.msra.mxu0 0.0
    %299 = vmatpush.xpose.msra.mxu0 0.0
    %300 = vmatpush.xpose.msra.mxu0 0.0
    %301 = vmatpush.xpose.msra.mxu0 0.0
    %302 = vmatpush.xpose.msra.mxu0 0.0
    %303 = vmatpush.xpose.msra.mxu0 0.0
    %304 = vmatpush.xpose.msra.mxu0 %v287
    %305 = vmatmul.f32.gmra.mxu0 %v285
    %v306 = vpop.f32.mrf.mxu0
    %v307 = vadd.f32 0.0, %v306
    %308 = vdwg.mxu0
    %v309 = vsel %vm158, %v279, -inf
    %310 = vmax.xlane.f32.xlu0 %v309
    %v311 = vpop.xlane.xlu0 %310
    %v312 = vsel %vm158, %v307, -inf
    %313 = vmax.xlane.f32.xlu0 %v312
    %v314 = vpop.xlane.xlu0 %313
    %v315 = vsub.f32 %v279, %v311
    %v316 = vsub.f32 %v307, %v314
    %v317 = vmul.f32 %v315, 1.442695
    %v318 = vpow.pop %v317
    %v319 = vmul.f32 %v316, 1.442695
    %v320 = vpow.pop %v319
    %v321 = vsel %vm158, %v318, 0.0
    %322 = vadd.xlane.f32.xlu0 %v321
    %v323 = vpop.xlane.xlu0 %322
    %v324 = vsel %vm158, %v320, 0.0
    %325 = vadd.xlane.f32.xlu0 %v324
    %v326 = vpop.xlane.xlu0 %325
    %v327 = vrcp.pop %v323
    %v328 = vmul.f32 %v323, %v327
    %v329 = vsub.f32 1.0, %v328
    %v330 = vmul.f32 %v327, %v329
    %v331 = vadd.f32 %v327, %v330
    %vm332 = vweird.f32 %v323
    %vm333 = vweird.f32 %v327
    %vm334 = vmor %vm332, %vm333
    %v335 = vsel %vm334, %v327, %v331
    %v336 = vand.u32 2147483647, %v323
    %vm337 = vcmp.eq.f32.partialorder %v336, 8.507059e+37
    %v338 = vand.u32 %v323, 2147483648
    %v339 = vor.u32 1.1754944e-38, %v338
    %v340 = vsel %vm337, %v339, %v335
    %v341 = vrcp.pop %v326
    %v342 = vmul.f32 %v326, %v341
    %v343 = vsub.f32 1.0, %v342
    %v344 = vmul.f32 %v341, %v343
    %v345 = vadd.f32 %v341, %v344
    %vm346 = vweird.f32 %v326
    %vm347 = vweird.f32 %v341
    %vm348 = vmor %vm346, %vm347
    %v349 = vsel %vm348, %v341, %v345
    %v350 = vand.u32 2147483647, %v326
    %vm351 = vcmp.eq.f32.partialorder %v350, 8.507059e+37
    %v352 = vand.u32 %v326, 2147483648
    %v353 = vor.u32 1.1754944e-38, %v352
    %v354 = vsel %vm351, %v353, %v349
    %v355 = vmul.f32 %v318, %v340
    %v356 = vmul.f32 %v320, %v354
    %358 = vrot.lane.b32.xlu0 %v98, 112
    %v359 = vpop.permute.xlu0 %358
    %v362 = vsel %vm158, %v355, 0
    %364 = vmatpush.msra.mxu0 0.0
    %365 = vmatpush.msra.mxu0 0.0
    %366 = vmatpush.msra.mxu0 0.0
    %367 = vmatpush.msra.mxu0 0.0
    %368 = vmatpush.msra.mxu0 0.0
    %369 = vmatpush.msra.mxu0 0.0
    %370 = vmatpush.msra.mxu0 0.0
    %371 = vmatpush.msra.mxu0 0.0
    %372 = vmatpush.msra.mxu0 0.0
    %373 = vmatpush.msra.mxu0 0.0
    %374 = vmatpush.msra.mxu0 0.0
    %375 = vmatpush.msra.mxu0 0.0
    %376 = vmatpush.msra.mxu0 0.0
    %377 = vmatpush.msra.mxu0 0.0
    %378 = vmatpush.msra.mxu0 0.0
    %379 = vmatpush.msra.mxu0 %v359
    %380 = vmatmul.f32.gmra.mxu0 %v362
    %v381 = vpop.f32.mrf.mxu0
    %v382 = vadd.f32 0.0, %v381
    %383 = vdwg.mxu0
    %385 = vrot.lane.b32.xlu0 %v101, 112
    %v386 = vpop.permute.xlu0 %385
    %v389 = vsel %vm158, %v356, 0
    %391 = vmatpush.msra.mxu0 0.0
    %392 = vmatpush.msra.mxu0 0.0
    %393 = vmatpush.msra.mxu0 0.0
    %394 = vmatpush.msra.mxu0 0.0
    %395 = vmatpush.msra.mxu0 0.0
    %396 = vmatpush.msra.mxu0 0.0
    %397 = vmatpush.msra.mxu0 0.0
    %398 = vmatpush.msra.mxu0 0.0
    %399 = vmatpush.msra.mxu0 0.0
    %400 = vmatpush.msra.mxu0 0.0
    %401 = vmatpush.msra.mxu0 0.0
    %402 = vmatpush.msra.mxu0 0.0
    %403 = vmatpush.msra.mxu0 0.0
    %404 = vmatpush.msra.mxu0 0.0
    %405 = vmatpush.msra.mxu0 0.0
    %406 = vmatpush.msra.mxu0 %v386
    %407 = vmatmul.f32.gmra.mxu0 %v389
    %v408 = vpop.f32.mrf.mxu0
    %v409 = vadd.f32 0.0, %v408
    %410 = vdwg.mxu0
    %411 = vrot.lane.b32.xlu0 %v75, 96
    %v412 = vpop.permute.xlu0 %411
    %413 = vrot.lane.b32.xlu0 %v75, 32
    %v414 = vpop.permute.xlu0 %413
    %v415 = vsel %vm106, %v412, 0
    %v417 = vsel %vm106, %v414, 0
    %419 = vmatpush.xpose.msra.mxu0 0.0
    %420 = vmatpush.xpose.msra.mxu0 0.0
    %421 = vmatpush.xpose.msra.mxu0 0.0
    %422 = vmatpush.xpose.msra.mxu0 0.0
    %423 = vmatpush.xpose.msra.mxu0 0.0
    %424 = vmatpush.xpose.msra.mxu0 0.0
    %425 = vmatpush.xpose.msra.mxu0 0.0
    %426 = vmatpush.xpose.msra.mxu0 0.0
    %427 = vmatpush.xpose.msra.mxu0 0.0
    %428 = vmatpush.xpose.msra.mxu0 0.0
    %429 = vmatpush.xpose.msra.mxu0 0.0
    %430 = vmatpush.xpose.msra.mxu0 0.0
    %431 = vmatpush.xpose.msra.mxu0 0.0
    %432 = vmatpush.xpose.msra.mxu0 0.0
    %433 = vmatpush.xpose.msra.mxu0 0.0
    %434 = vmatpush.xpose.msra.mxu0 %v417
    %435 = vmatmul.f32.gmra.mxu0 %v415
    %v436 = vpop.f32.mrf.mxu0
    %v437 = vadd.f32 0.0, %v436
    %438 = vdwg.mxu0
    %439 = vrot.lane.b32.xlu0 %v78, 96
    %v440 = vpop.permute.xlu0 %439
    %441 = vrot.lane.b32.xlu0 %v78, 32
    %v442 = vpop.permute.xlu0 %441
    %v443 = vsel %vm106, %v440, 0
    %v445 = vsel %vm106, %v442, 0
    %447 = vmatpush.xpose.msra.mxu0 0.0
    %448 = vmatpush.xpose.msra.mxu0 0.0
    %449 = vmatpush.xpose.msra.mxu0 0.0
    %450 = vmatpush.xpose.msra.mxu0 0.0
    %451 = vmatpush.xpose.msra.mxu0 0.0
    %452 = vmatpush.xpose.msra.mxu0 0.0
    %453 = vmatpush.xpose.msra.mxu0 0.0
    %454 = vmatpush.xpose.msra.mxu0 0.0
    %455 = vmatpush.xpose.msra.mxu0 0.0
    %456 = vmatpush.xpose.msra.mxu0 0.0
    %457 = vmatpush.xpose.msra.mxu0 0.0
    %458 = vmatpush.xpose.msra.mxu0 0.0
    %459 = vmatpush.xpose.msra.mxu0 0.0
    %460 = vmatpush.xpose.msra.mxu0 0.0
    %461 = vmatpush.xpose.msra.mxu0 0.0
    %462 = vmatpush.xpose.msra.mxu0 %v445
    %463 = vmatmul.f32.gmra.mxu0 %v443
    %v464 = vpop.f32.mrf.mxu0
    %v465 = vadd.f32 0.0, %v464
    %466 = vdwg.mxu0
    %v467 = vsel %vm158, %v437, -inf
    %468 = vmax.xlane.f32.xlu0 %v467
    %v469 = vpop.xlane.xlu0 %468
    %v470 = vsel %vm158, %v465, -inf
    %471 = vmax.xlane.f32.xlu0 %v470
    %v472 = vpop.xlane.xlu0 %471
    %v473 = vsub.f32 %v437, %v469
    %v474 = vsub.f32 %v465, %v472
    %v475 = vmul.f32 %v473, 1.442695
    %v476 = vpow.pop %v475
    %v477 = vmul.f32 %v474, 1.442695
    %v478 = vpow.pop %v477
    %v479 = vsel %vm158, %v476, 0.0
    %480 = vadd.xlane.f32.xlu0 %v479
    %v481 = vpop.xlane.xlu0 %480
    %v482 = vsel %vm158, %v478, 0.0
    %483 = vadd.xlane.f32.xlu0 %v482
    %v484 = vpop.xlane.xlu0 %483
    %v485 = vrcp.pop %v481
    %v486 = vmul.f32 %v481, %v485
    %v487 = vsub.f32 1.0, %v486
    %v488 = vmul.f32 %v485, %v487
    %v489 = vadd.f32 %v485, %v488
    %vm490 = vweird.f32 %v481
    %vm491 = vweird.f32 %v485
    %vm492 = vmor %vm490, %vm491
    %v493 = vsel %vm492, %v485, %v489
    %v494 = vand.u32 2147483647, %v481
    %vm495 = vcmp.eq.f32.partialorder %v494, 8.507059e+37
    %v496 = vand.u32 %v481, 2147483648
    %v497 = vor.u32 1.1754944e-38, %v496
    %v498 = vsel %vm495, %v497, %v493
    %v499 = vrcp.pop %v484
    %v500 = vmul.f32 %v484, %v499
    %v501 = vsub.f32 1.0, %v500
    %v502 = vmul.f32 %v499, %v501
    %v503 = vadd.f32 %v499, %v502
    %vm504 = vweird.f32 %v484
    %vm505 = vweird.f32 %v499
    %vm506 = vmor %vm504, %vm505
    %v507 = vsel %vm506, %v499, %v503
    %v508 = vand.u32 2147483647, %v484
    %vm509 = vcmp.eq.f32.partialorder %v508, 8.507059e+37
    %v510 = vand.u32 %v484, 2147483648
    %v511 = vor.u32 1.1754944e-38, %v510
    %v512 = vsel %vm509, %v511, %v507
    %v513 = vmul.f32 %v476, %v498
    %v514 = vmul.f32 %v478, %v512
    %515 = vrot.lane.b32.xlu0 %v98, 96
    %v516 = vpop.permute.xlu0 %515
    %v519 = vsel %vm158, %v513, 0
    %521 = vmatpush.msra.mxu0 0.0
    %522 = vmatpush.msra.mxu0 0.0
    %523 = vmatpush.msra.mxu0 0.0
    %524 = vmatpush.msra.mxu0 0.0
    %525 = vmatpush.msra.mxu0 0.0
    %526 = vmatpush.msra.mxu0 0.0
    %527 = vmatpush.msra.mxu0 0.0
    %528 = vmatpush.msra.mxu0 0.0
    %529 = vmatpush.msra.mxu0 0.0
    %530 = vmatpush.msra.mxu0 0.0
    %531 = vmatpush.msra.mxu0 0.0
    %532 = vmatpush.msra.mxu0 0.0
    %533 = vmatpush.msra.mxu0 0.0
    %534 = vmatpush.msra.mxu0 0.0
    %535 = vmatpush.msra.mxu0 0.0
    %536 = vmatpush.msra.mxu0 %v516
    %537 = vmatmul.f32.gmra.mxu0 %v519
    %v538 = vpop.f32.mrf.mxu0
    %v539 = vadd.f32 0.0, %v538
    %540 = vdwg.mxu0
    %541 = vrot.lane.b32.xlu0 %v101, 96
    %v542 = vpop.permute.xlu0 %541
    %v545 = vsel %vm158, %v514, 0
    %547 = vmatpush.msra.mxu0 0.0
    %548 = vmatpush.msra.mxu0 0.0
    %549 = vmatpush.msra.mxu0 0.0
    %550 = vmatpush.msra.mxu0 0.0
    %551 = vmatpush.msra.mxu0 0.0
    %552 = vmatpush.msra.mxu0 0.0
    %553 = vmatpush.msra.mxu0 0.0
    %554 = vmatpush.msra.mxu0 0.0
    %555 = vmatpush.msra.mxu0 0.0
    %556 = vmatpush.msra.mxu0 0.0
    %557 = vmatpush.msra.mxu0 0.0
    %558 = vmatpush.msra.mxu0 0.0
    %559 = vmatpush.msra.mxu0 0.0
    %560 = vmatpush.msra.mxu0 0.0
    %561 = vmatpush.msra.mxu0 0.0
    %562 = vmatpush.msra.mxu0 %v542
    %563 = vmatmul.f32.gmra.mxu0 %v545
    %v564 = vpop.f32.mrf.mxu0
    %v565 = vadd.f32 0.0, %v564
    %566 = vdwg.mxu0
    %567 = vrot.lane.b32.xlu0 %v75, 80
    %v568 = vpop.permute.xlu0 %567
    %569 = vrot.lane.b32.xlu0 %v75, 16
    %v570 = vpop.permute.xlu0 %569
    %v571 = vsel %vm106, %v568, 0
    %v573 = vsel %vm106, %v570, 0
    %575 = vmatpush.xpose.msra.mxu0 0.0
    %576 = vmatpush.xpose.msra.mxu0 0.0
    %577 = vmatpush.xpose.msra.mxu0 0.0
    %578 = vmatpush.xpose.msra.mxu0 0.0
    %579 = vmatpush.xpose.msra.mxu0 0.0
    %580 = vmatpush.xpose.msra.mxu0 0.0
    %581 = vmatpush.xpose.msra.mxu0 0.0
    %582 = vmatpush.xpose.msra.mxu0 0.0
    %583 = vmatpush.xpose.msra.mxu0 0.0
    %584 = vmatpush.xpose.msra.mxu0 0.0
    %585 = vmatpush.xpose.msra.mxu0 0.0
    %586 = vmatpush.xpose.msra.mxu0 0.0
    %587 = vmatpush.xpose.msra.mxu0 0.0
    %588 = vmatpush.xpose.msra.mxu0 0.0
    %589 = vmatpush.xpose.msra.mxu0 0.0
    %590 = vmatpush.xpose.msra.mxu0 %v573
    %591 = vmatmul.f32.gmra.mxu0 %v571
    %v592 = vpop.f32.mrf.mxu0
    %v593 = vadd.f32 0.0, %v592
    %594 = vdwg.mxu0
    %595 = vrot.lane.b32.xlu0 %v78, 80
    %v596 = vpop.permute.xlu0 %595
    %597 = vrot.lane.b32.xlu0 %v78, 16
    %v598 = vpop.permute.xlu0 %597
    %v599 = vsel %vm106, %v596, 0
    %v601 = vsel %vm106, %v598, 0
    %603 = vmatpush.xpose.msra.mxu0 0.0
    %604 = vmatpush.xpose.msra.mxu0 0.0
    %605 = vmatpush.xpose.msra.mxu0 0.0
    %606 = vmatpush.xpose.msra.mxu0 0.0
    %607 = vmatpush.xpose.msra.mxu0 0.0
    %608 = vmatpush.xpose.msra.mxu0 0.0
    %609 = vmatpush.xpose.msra.mxu0 0.0
    %610 = vmatpush.xpose.msra.mxu0 0.0
    %611 = vmatpush.xpose.msra.mxu0 0.0
    %612 = vmatpush.xpose.msra.mxu0 0.0
    %613 = vmatpush.xpose.msra.mxu0 0.0
    %614 = vmatpush.xpose.msra.mxu0 0.0
    %615 = vmatpush.xpose.msra.mxu0 0.0
    %616 = vmatpush.xpose.msra.mxu0 0.0
    %617 = vmatpush.xpose.msra.mxu0 0.0
    %618 = vmatpush.xpose.msra.mxu0 %v601
    %619 = vmatmul.f32.gmra.mxu0 %v599
    %v620 = vpop.f32.mrf.mxu0
    %v621 = vadd.f32 0.0, %v620
    %622 = vdwg.mxu0
    %v623 = vsel %vm158, %v593, -inf
    %624 = vmax.xlane.f32.xlu0 %v623
    %v625 = vpop.xlane.xlu0 %624
    %v626 = vsel %vm158, %v621, -inf
    %627 = vmax.xlane.f32.xlu0 %v626
    %v628 = vpop.xlane.xlu0 %627
    %v629 = vsub.f32 %v593, %v625
    %v630 = vsub.f32 %v621, %v628
    %v631 = vmul.f32 %v629, 1.442695
    %v632 = vpow.pop %v631
    %v633 = vmul.f32 %v630, 1.442695
    %v634 = vpow.pop %v633
    %v635 = vsel %vm158, %v632, 0.0
    %636 = vadd.xlane.f32.xlu0 %v635
    %v637 = vpop.xlane.xlu0 %636
    %v638 = vsel %vm158, %v634, 0.0
    %639 = vadd.xlane.f32.xlu0 %v638
    %v640 = vpop.xlane.xlu0 %639
    %v641 = vrcp.pop %v637
    %v642 = vmul.f32 %v637, %v641
    %v643 = vsub.f32 1.0, %v642
    %v644 = vmul.f32 %v641, %v643
    %v645 = vadd.f32 %v641, %v644
    %vm646 = vweird.f32 %v637
    %vm647 = vweird.f32 %v641
    %vm648 = vmor %vm646, %vm647
    %v649 = vsel %vm648, %v641, %v645
    %v650 = vand.u32 2147483647, %v637
    %vm651 = vcmp.eq.f32.partialorder %v650, 8.507059e+37
    %v652 = vand.u32 %v637, 2147483648
    %v653 = vor.u32 1.1754944e-38, %v652
    %v654 = vsel %vm651, %v653, %v649
    %v655 = vrcp.pop %v640
    %v656 = vmul.f32 %v640, %v655
    %v657 = vsub.f32 1.0, %v656
    %v658 = vmul.f32 %v655, %v657
    %v659 = vadd.f32 %v655, %v658
    %vm660 = vweird.f32 %v640
    %vm661 = vweird.f32 %v655
    %vm662 = vmor %vm660, %vm661
    %v663 = vsel %vm662, %v655, %v659
    %v664 = vand.u32 2147483647, %v640
    %vm665 = vcmp.eq.f32.partialorder %v664, 8.507059e+37
    %v666 = vand.u32 %v640, 2147483648
    %v667 = vor.u32 1.1754944e-38, %v666
    %v668 = vsel %vm665, %v667, %v663
    %v669 = vmul.f32 %v632, %v654
    %v670 = vmul.f32 %v634, %v668
    %671 = vrot.lane.b32.xlu0 %v98, 80
    %v672 = vpop.permute.xlu0 %671
    %v675 = vsel %vm158, %v669, 0
    %677 = vmatpush.msra.mxu0 0.0
    %678 = vmatpush.msra.mxu0 0.0
    %679 = vmatpush.msra.mxu0 0.0
    %680 = vmatpush.msra.mxu0 0.0
    %681 = vmatpush.msra.mxu0 0.0
    %682 = vmatpush.msra.mxu0 0.0
    %683 = vmatpush.msra.mxu0 0.0
    %684 = vmatpush.msra.mxu0 0.0
    %685 = vmatpush.msra.mxu0 0.0
    %686 = vmatpush.msra.mxu0 0.0
    %687 = vmatpush.msra.mxu0 0.0
    %688 = vmatpush.msra.mxu0 0.0
    %689 = vmatpush.msra.mxu0 0.0
    %690 = vmatpush.msra.mxu0 0.0
    %691 = vmatpush.msra.mxu0 0.0
    %692 = vmatpush.msra.mxu0 %v672
    %693 = vmatmul.f32.gmra.mxu0 %v675
    %v694 = vpop.f32.mrf.mxu0
    %v695 = vadd.f32 0.0, %v694
    %696 = vdwg.mxu0
    %697 = vrot.lane.b32.xlu0 %v101, 80
    %v698 = vpop.permute.xlu0 %697
    %v701 = vsel %vm158, %v670, 0
    %703 = vmatpush.msra.mxu0 0.0
    %704 = vmatpush.msra.mxu0 0.0
    %705 = vmatpush.msra.mxu0 0.0
    %706 = vmatpush.msra.mxu0 0.0
    %707 = vmatpush.msra.mxu0 0.0
    %708 = vmatpush.msra.mxu0 0.0
    %709 = vmatpush.msra.mxu0 0.0
    %710 = vmatpush.msra.mxu0 0.0
    %711 = vmatpush.msra.mxu0 0.0
    %712 = vmatpush.msra.mxu0 0.0
    %713 = vmatpush.msra.mxu0 0.0
    %714 = vmatpush.msra.mxu0 0.0
    %715 = vmatpush.msra.mxu0 0.0
    %716 = vmatpush.msra.mxu0 0.0
    %717 = vmatpush.msra.mxu0 0.0
    %718 = vmatpush.msra.mxu0 %v698
    %719 = vmatmul.f32.gmra.mxu0 %v701
    %v720 = vpop.f32.mrf.mxu0
    %v721 = vadd.f32 0.0, %v720
    %722 = vdwg.mxu0
    %725 = vrot.lane.b32.xlu0 %v382, 16
    %v726 = vpop.permute.xlu0 %725
    %727 = vrot.lane.b32.xlu0 %v409, 16
    %v728 = vpop.permute.xlu0 %727
    %733 = vrot.lane.b32.xlu0 %v539, 32
    %v734 = vpop.permute.xlu0 %733
    %735 = vrot.lane.b32.xlu0 %v565, 32
    %v736 = vpop.permute.xlu0 %735
    %741 = vrot.lane.b32.xlu0 %v695, 48
    %v742 = vpop.permute.xlu0 %741
    %743 = vrot.lane.b32.xlu0 %v721, 48
    %v744 = vpop.permute.xlu0 %743
    %v747 = vsel %vm106, %v228, %v726
    %v748 = vsel %vm106, %v251, %v728
    %vm749 = vcmask 261120
    %v750 = vsel %vm749, %v747, %v734
    %v751 = vsel %vm749, %v748, %v736
    %vm752 = vcmask 392192
    %v753 = vsel %vm752, %v750, %v742
    %v754 = vsel %vm752, %v751, %v744
    %v755 = vld [vmem:[%s2] sm:$0xff]
    %v756 = vld [vmem:[%s2 + $0x8] sm:$0xff]
    %v757 = vld [vmem:[%s2 + $0x10] sm:$0xff]
    %v758 = vld [vmem:[%s2 + $0x18] sm:$0xff]
    %v759 = vld [vmem:[%s2 + $0x20] sm:$0xff]
    %v760 = vld [vmem:[%s2 + $0x28] sm:$0xff]
    %v761 = vld [vmem:[%s2 + $0x30] sm:$0xff]
    %v762 = vld [vmem:[%s2 + $0x38] sm:$0xff]
    %v763 = vperm.slane %v26, 2
    %v765 = vsel %vm50, %v753, 0
    %v768 = vsel %vm50, %v754, 0
    %770 = vmatpush.msra.mxu0 0.0
    %771 = vmatpush.msra.mxu0 0.0
    %772 = vmatpush.msra.mxu0 0.0
    %773 = vmatpush.msra.mxu0 0.0
    %774 = vmatpush.msra.mxu0 0.0
    %775 = vmatpush.msra.mxu0 0.0
    %776 = vmatpush.msra.mxu0 0.0
    %777 = vmatpush.msra.mxu0 0.0
    %778 = vmatpush.msra.mxu0 %v762
    %779 = vmatpush.msra.mxu0 %v761
    %780 = vmatpush.msra.mxu0 %v760
    %781 = vmatpush.msra.mxu0 %v759
    %782 = vmatpush.msra.mxu0 %v758
    %783 = vmatpush.msra.mxu0 %v757
    %784 = vmatpush.msra.mxu0 %v756
    %785 = vmatpush.msra.mxu0 %v755
    %786 = vmatmul.f32.gmra.mxu0 %v765
    %v787 = vpop.f32.mrf.mxu0
    %v788 = vadd.f32 %v763, %v787
    %789 = vmatmul.f32.gmra.mxu0 %v768
    %v790 = vpop.f32.mrf.mxu0
    %v791 = vadd.f32 %v763, %v790
    %792 = vdwg.mxu0
    %v793 = vadd.f32 %v788, %v24
    %v794 = vadd.f32 %v791, %v25
    %v795 = vld [vmem:[%s3] sm:$0xff]
    %v796 = vld [vmem:[%s3 + $0x8] sm:$0xff]
    %v797 = vld [vmem:[%s3 + $0x10] sm:$0xff]
    %v798 = vld [vmem:[%s3 + $0x18] sm:$0xff]
    %v799 = vld [vmem:[%s3 + $0x20] sm:$0xff]
    %v800 = vld [vmem:[%s3 + $0x28] sm:$0xff]
    %v801 = vld [vmem:[%s3 + $0x30] sm:$0xff]
    %v802 = vld [vmem:[%s3 + $0x38] sm:$0xff]
    %v803 = vld [vmem:[%s3 + $0x40] sm:$0xff]
    %v804 = vld [vmem:[%s3 + $0x48] sm:$0xff]
    %v805 = vld [vmem:[%s3 + $0x50] sm:$0xff]
    %v806 = vld [vmem:[%s3 + $0x58] sm:$0xff]
    %v807 = vld [vmem:[%s3 + $0x60] sm:$0xff]
    %v808 = vld [vmem:[%s3 + $0x68] sm:$0xff]
    %v809 = vld [vmem:[%s3 + $0x70] sm:$0xff]
    %v810 = vld [vmem:[%s3 + $0x78] sm:$0xff]
    %v811 = vperm.slane %v26, 0
    %v812 = vperm.slane %v26, 4
    %v815 = vperm.slane %v811, 0
    %v816 = vperm.slane %v812, 0
    %v818 = vsel %vm50, %v793, 0
    %v821 = vsel %vm50, %v794, 0
    %823 = vmatpush.msra.mxu0 0.0
    %824 = vmatpush.msra.mxu0 0.0
    %825 = vmatpush.msra.mxu0 0.0
    %826 = vmatpush.msra.mxu0 0.0
    %827 = vmatpush.msra.mxu0 0.0
    %828 = vmatpush.msra.mxu0 0.0
    %829 = vmatpush.msra.mxu0 0.0
    %830 = vmatpush.msra.mxu0 0.0
    %831 = vmatpush.msra.mxu0 %v809
    %832 = vmatpush.msra.mxu0 %v807
    %833 = vmatpush.msra.mxu0 %v805
    %834 = vmatpush.msra.mxu0 %v803
    %835 = vmatpush.msra.mxu0 %v801
    %836 = vmatpush.msra.mxu0 %v799
    %837 = vmatpush.msra.mxu0 %v797
    %838 = vmatpush.msra.mxu0 %v795
    %839 = vmatmul.f32.gmra.mxu0 %v818
    %v840 = vpop.f32.mrf.mxu0
    %v841 = vadd.f32 %v815, %v840
    %842 = vmatmul.f32.gmra.mxu0 %v821
    %v843 = vpop.f32.mrf.mxu0
    %v844 = vadd.f32 %v815, %v843
    %845 = vdwg.mxu0
    %846 = vmatpush.msra.mxu0 0.0
    %847 = vmatpush.msra.mxu0 0.0
    %848 = vmatpush.msra.mxu0 0.0
    %849 = vmatpush.msra.mxu0 0.0
    %850 = vmatpush.msra.mxu0 0.0
    %851 = vmatpush.msra.mxu0 0.0
    %852 = vmatpush.msra.mxu0 0.0
    %853 = vmatpush.msra.mxu0 0.0
    %854 = vmatpush.msra.mxu0 %v810
    %855 = vmatpush.msra.mxu0 %v808
    %856 = vmatpush.msra.mxu0 %v806
    %857 = vmatpush.msra.mxu0 %v804
    %858 = vmatpush.msra.mxu0 %v802
    %859 = vmatpush.msra.mxu0 %v800
    %860 = vmatpush.msra.mxu0 %v798
    %861 = vmatpush.msra.mxu0 %v796
    %862 = vmatmul.f32.gmra.mxu0 %v818
    %v863 = vpop.f32.mrf.mxu0
    %v864 = vadd.f32 %v816, %v863
    %865 = vmatmul.f32.gmra.mxu0 %v821
    %v866 = vpop.f32.mrf.mxu0
    %v867 = vadd.f32 %v816, %v866
    %868 = vdwg.mxu0
    %v869 = vmax.f32 %v841, 0.0
    %v870 = vmax.f32 %v864, 0.0
    %v871 = vmax.f32 %v844, 0.0
    %v872 = vmax.f32 %v867, 0.0
    %v873 = vld [vmem:[%s4] sm:$0xff]
    %v874 = vld [vmem:[%s4 + $0x8] sm:$0xff]
    %v875 = vld [vmem:[%s4 + $0x10] sm:$0xff]
    %v876 = vld [vmem:[%s4 + $0x18] sm:$0xff]
    %v877 = vld [vmem:[%s4 + $0x20] sm:$0xff]
    %v878 = vld [vmem:[%s4 + $0x28] sm:$0xff]
    %v879 = vld [vmem:[%s4 + $0x30] sm:$0xff]
    %v880 = vld [vmem:[%s4 + $0x38] sm:$0xff]
    %v881 = vld [vmem:[%s4 + $0x40] sm:$0xff]
    %v882 = vld [vmem:[%s4 + $0x48] sm:$0xff]
    %v883 = vld [vmem:[%s4 + $0x50] sm:$0xff]
    %v884 = vld [vmem:[%s4 + $0x58] sm:$0xff]
    %v885 = vld [vmem:[%s4 + $0x60] sm:$0xff]
    %v886 = vld [vmem:[%s4 + $0x68] sm:$0xff]
    %v887 = vld [vmem:[%s4 + $0x70] sm:$0xff]
    %v888 = vld [vmem:[%s4 + $0x78] sm:$0xff]
    %v889 = vld [vmem:[%s4 + $0x80] sm:$0xff]
    %v890 = vld [vmem:[%s4 + $0x88] sm:$0xff]
    %v891 = vld [vmem:[%s4 + $0x90] sm:$0xff]
    %v892 = vld [vmem:[%s4 + $0x98] sm:$0xff]
    %v893 = vld [vmem:[%s4 + $0xa0] sm:$0xff]
    %v894 = vld [vmem:[%s4 + $0xa8] sm:$0xff]
    %v895 = vld [vmem:[%s4 + $0xb0] sm:$0xff]
    %v896 = vld [vmem:[%s4 + $0xb8] sm:$0xff]
    %v897 = vld [vmem:[%s4 + $0xc0] sm:$0xff]
    %v898 = vld [vmem:[%s4 + $0xc8] sm:$0xff]
    %v899 = vld [vmem:[%s4 + $0xd0] sm:$0xff]
    %v900 = vld [vmem:[%s4 + $0xd8] sm:$0xff]
    %v901 = vld [vmem:[%s4 + $0xe0] sm:$0xff]
    %v902 = vld [vmem:[%s4 + $0xe8] sm:$0xff]
    %v903 = vld [vmem:[%s4 + $0xf0] sm:$0xff]
    %v904 = vld [vmem:[%s4 + $0xf8] sm:$0xff]
    %v905 = vperm.slane %v26, 3
    %906 = vmatpush.msra.mxu0 %v888
    %907 = vmatpush.msra.mxu0 %v887
    %908 = vmatpush.msra.mxu0 %v886
    %909 = vmatpush.msra.mxu0 %v885
    %910 = vmatpush.msra.mxu0 %v884
    %911 = vmatpush.msra.mxu0 %v883
    %912 = vmatpush.msra.mxu0 %v882
    %913 = vmatpush.msra.mxu0 %v881
    %914 = vmatpush.msra.mxu0 %v880
    %915 = vmatpush.msra.mxu0 %v879
    %916 = vmatpush.msra.mxu0 %v878
    %917 = vmatpush.msra.mxu0 %v877
    %918 = vmatpush.msra.mxu0 %v876
    %919 = vmatpush.msra.mxu0 %v875
    %920 = vmatpush.msra.mxu0 %v874
    %921 = vmatpush.msra.mxu0 %v873
    %922 = vmatmul.f32.gmra.mxu0 %v869
    %v923 = vpop.f32.mrf.mxu0
    %v924 = vadd.f32 %v905, %v923
    %925 = vmatmul.f32.gmra.mxu0 %v871
    %v926 = vpop.f32.mrf.mxu0
    %v927 = vadd.f32 %v905, %v926
    %928 = vdwg.mxu0
    %929 = vmatpush.msra.mxu0 %v904
    %930 = vmatpush.msra.mxu0 %v903
    %931 = vmatpush.msra.mxu0 %v902
    %932 = vmatpush.msra.mxu0 %v901
    %933 = vmatpush.msra.mxu0 %v900
    %934 = vmatpush.msra.mxu0 %v899
    %935 = vmatpush.msra.mxu0 %v898
    %936 = vmatpush.msra.mxu0 %v897
    %937 = vmatpush.msra.mxu0 %v896
    %938 = vmatpush.msra.mxu0 %v895
    %939 = vmatpush.msra.mxu0 %v894
    %940 = vmatpush.msra.mxu0 %v893
    %941 = vmatpush.msra.mxu0 %v892
    %942 = vmatpush.msra.mxu0 %v891
    %943 = vmatpush.msra.mxu0 %v890
    %944 = vmatpush.msra.mxu0 %v889
    %945 = vmatmul.f32.gmra.mxu0 %v870
    %v946 = vpop.f32.mrf.mxu0
    %v947 = vadd.f32 %v924, %v946
    %948 = vmatmul.f32.gmra.mxu0 %v872
    %v949 = vpop.f32.mrf.mxu0
    %v950 = vadd.f32 %v927, %v949
    %951 = vdwg.mxu0
    %v952 = vadd.f32 %v947, %v793
    %v953 = vadd.f32 %v950, %v794
    %954 = vst.msk [vmem:[#allocation2] sm:$0xff] %vm50, %v952
    %955 = vst.msk [vmem:[#allocation2 + $0x8] sm:$0xff] %vm50, %v953
    // Predicated region
    $region26: #{tpu_custom_call.1} parent=1 // pred_check
      _
    $region27: #{tpu_custom_call.1} parent=1 // pred_check_branch
      %957 = sbr.rel (0) target = $region29
    $region28: #{tpu_custom_call.1} parent=1 // pred_region
      %959 = vsyncadd [#allocation3], 0
      %s960 = sshll.u32 [#allocation2], 4
      %s961 = int_to_ptr.vmem [resolvable:$true] %s960
      %s962 = sshll.u32 %s6, 4
      %s963 = int_to_ptr.hbm [resolvable:$true] %s962
      %968 = dma.vmem_to_hbm [thread:$0]  %s961, 256, %s963, [#allocation3], 128, 128, 8
    $region29: #{tpu_custom_call.1} parent=1 // pred_fallthru
      _
    // Predicated region
    $region30: #{tpu_custom_call.1} parent=1 // pred_check
      _
    $region31: #{tpu_custom_call.1} parent=1 // pred_check_branch
      %970 = sbr.rel (0) target = $region33
    $region32: #{tpu_custom_call.1} parent=1 // pred_region
      %972 = dma.done [#allocation3], 256
    $region33: #{tpu_custom_call.1} parent=1 // pred_fallthru
      _
    %973 = vsyncpa [#allocation3], 1

</llo_original>
